<compile_context>
chip_gen: v7x
topology: tpu7x:2x2x1
jax: 0.10.0
libtpu: 0.0.40
codegen_flags: <defaults>
</compile_context>

<pallas_src>
import functools

import jax
import jax.numpy as jnp
from jax.experimental import pallas as pl
from jax.experimental.pallas import tpu as pltpu

BN_EPS = 1e-5
LANE = 128
SUBLANE = 8
NEG_INF_LOGIT = -1e30  # padded-class bias so padded logits vanish in softmax


def _round_up(v, m):
    return (v + m - 1) // m * m


def linear_cls_kernel(x_ref, w0_ref, b0_ref, gamma_ref, beta_ref, w1_ref, b1_ref,
                      o_ref, sum_ref, sumsq_ref, *, batch, tile_b):
    """Two-phase kernel over grid (phase, batch_tile).

    phase 0: fc0 matmul per batch tile, accumulate batch sum / sum-of-squares
             of the hidden activations into VMEM scratch (masked so zero-padded
             batch rows do not pollute the statistics).
    phase 1: recompute fc0 per tile (cheaper than spilling h to HBM at these
             sizes), normalize with the FULL-batch statistics (training-mode
             BatchNorm1d), ReLU, fc, log_softmax, store a lane-dense output.
    """
    phase = pl.program_id(0)
    i = pl.program_id(1)

    # fc0 on the MXU: bf16 operands, f32 accumulation.
    x_bf = x_ref[...].astype(jnp.bfloat16)
    h = jnp.dot(x_bf, w0_ref[...], preferred_element_type=jnp.float32) + b0_ref[...]

    @pl.when(phase == 0)
    def _stats_phase():
        @pl.when(i == 0)
        def _init():
            sum_ref[...] = jnp.zeros_like(sum_ref)
            sumsq_ref[...] = jnp.zeros_like(sumsq_ref)

        # Mask out zero-padded batch rows so they don't bias the BN statistics.
        rows = jax.lax.broadcasted_iota(jnp.int32, h.shape, 0) + i * tile_b
        hm = jnp.where(rows < batch, h, 0.0)
        sum_ref[...] += jnp.sum(hm, axis=0, keepdims=True)
        sumsq_ref[...] += jnp.sum(hm * hm, axis=0, keepdims=True)

    @pl.when(phase == 1)
    def _output_phase():
        inv_n = 1.0 / batch  # biased (training-mode) batch variance, like PyTorch
        mean = sum_ref[...] * inv_n
        # Fused single-pass variance: E[h^2] - mean^2, clamped at 0.
        var = jnp.maximum(sumsq_ref[...] * inv_n - mean * mean, 0.0)
        hn = (h - mean) * jax.lax.rsqrt(var + BN_EPS) * gamma_ref[...] + beta_ref[...]
        hn = jnp.maximum(hn, 0.0)  # ReLU

        # fc on the MXU: bf16 operands, f32 accumulation. Padded classes carry a
        # -1e30 bias so they contribute nothing to the logsumexp below.
        logits = jnp.dot(hn.astype(jnp.bfloat16), w1_ref[...],
                         preferred_element_type=jnp.float32) + b1_ref[...]

        # Numerically-stable log_softmax over the (lane-dense) class axis.
        m = jnp.max(logits, axis=-1, keepdims=True)
        z = logits - m
        lse = jnp.log(jnp.sum(jnp.exp(z), axis=-1, keepdims=True))
        o_ref[...] = (z - lse).astype(o_ref.dtype)


@jax.jit
def linear_cls_forward(x, params):
    """x: (B, in_channels) float32. Returns log-probabilities (B, num_classes)."""
    w0, b0, gamma, beta, w1, b1 = params
    B, cin = x.shape
    hid = w0.shape[1]
    ncls = w1.shape[1]

    # Lane/sublane-dense padded sizes.
    cin_p = _round_up(cin, LANE)
    hid_p = _round_up(hid, LANE)
    ncls_p = _round_up(ncls, LANE)
    tb = 256 if B > 256 else _round_up(B, SUBLANE)   # batch tile (MXU-friendly)
    b_p = _round_up(B, tb)
    nb = b_p // tb

    # Zero padding is exact: padded inputs/weights contribute nothing; padded
    # hidden columns normalize to 0 (gamma=1, beta=0); padded classes get -1e30.
    xp = jnp.pad(x.astype(jnp.float32), ((0, b_p - B), (0, cin_p - cin)))
    w0p = jnp.pad(w0, ((0, cin_p - cin), (0, hid_p - hid))).astype(jnp.bfloat16)
    b0p = jnp.pad(b0.reshape(1, -1), ((0, 0), (0, hid_p - hid)))
    gammap = jnp.pad(gamma.reshape(1, -1), ((0, 0), (0, hid_p - hid)),
                     constant_values=1.0)
    betap = jnp.pad(beta.reshape(1, -1), ((0, 0), (0, hid_p - hid)))
    w1p = jnp.pad(w1, ((0, hid_p - hid), (0, ncls_p - ncls))).astype(jnp.bfloat16)
    b1p = jnp.pad(b1.reshape(1, -1), ((0, 0), (0, ncls_p - ncls)),
                  constant_values=NEG_INF_LOGIT)

    # Explicit VMEM budget (double-buffered x/out tiles + resident bf16 weights
    # + vectors/scratch), with generous headroom; safe on v5e/v6e/v7x defaults.
    tile_bytes = (2 * (tb * cin_p * 4 + tb * ncls_p * 4)
                  + cin_p * hid_p * 2 + hid_p * ncls_p * 2
                  + 6 * hid_p * 4 + 2 * ncls_p * 4)
    vmem_limit = int(min(max(4 * tile_bytes, 16 * 1024 * 1024), 100 * 1024 * 1024))

    cost = pl.CostEstimate(
        flops=2 * b_p * cin_p * hid_p * 2 + 2 * b_p * hid_p * ncls_p,
        transcendentals=b_p * ncls_p + b_p + b_p * hid_p,
        bytes_accessed=2 * xp.size * 4 + w0p.size * 2 + w1p.size * 2
                       + (b0p.size + gammap.size + betap.size + b1p.size) * 4
                       + b_p * ncls_p * 4,
    )

    # TODO(synk): v7x megacore — mark the batch axis parallel and combine the BN
    # statistics across the two TensorCores (CMEM/VMEM_SHARED reduction); kept
    # sequential here so the batch-wide statistics stay trivially correct.
    out = pl.pallas_call(
        functools.partial(linear_cls_kernel, batch=B, tile_b=tb),
        out_shape=jax.ShapeDtypeStruct((b_p, ncls_p), jnp.float32),
        grid_spec=pltpu.PrefetchScalarGridSpec(
            num_scalar_prefetch=0,
            grid=(2, nb),  # (phase, batch tile)
            in_specs=[
                pl.BlockSpec((tb, cin_p), lambda p, i: (i, 0)),      # x tile
                pl.BlockSpec((cin_p, hid_p), lambda p, i: (0, 0)),   # w0 (resident)
                pl.BlockSpec((1, hid_p), lambda p, i: (0, 0)),       # b0
                pl.BlockSpec((1, hid_p), lambda p, i: (0, 0)),       # gamma
                pl.BlockSpec((1, hid_p), lambda p, i: (0, 0)),       # beta
                pl.BlockSpec((hid_p, ncls_p), lambda p, i: (0, 0)),  # w1 (resident)
                pl.BlockSpec((1, ncls_p), lambda p, i: (0, 0)),      # b1
            ],
            out_specs=pl.BlockSpec((tb, ncls_p), lambda p, i: (i, 0)),
            scratch_shapes=[pltpu.VMEM((1, hid_p), jnp.float32),   # sum(h)
                            pltpu.VMEM((1, hid_p), jnp.float32)],  # sum(h*h)
        ),
        compiler_params=pltpu.CompilerParams(
            # Both axes sequential: batch-wide BN stats accumulate across tiles
            # in phase 0 before phase 1 consumes them.
            dimension_semantics=("arbitrary", "arbitrary"),
            vmem_limit_bytes=vmem_limit,
        ),
        cost_estimate=cost,
    )(xp, w0p, b0p, gammap, betap, w1p, b1p)

    return out[:B, :ncls]


def init_params(key, in_channels, hidden_dim, num_classes):
    """Deterministic init mirroring LinearCls.init_weights():
       Linear weights ~ N(mean=1, std=0.01), Linear biases = 0.
       BatchNorm1d keeps PyTorch defaults (gamma=1, beta=0) — init_weights only
       touches BatchNorm2d/GroupNorm/Linear."""
    k0, k1 = jax.random.split(key)
    # fc0.weight in PyTorch is (hidden, in); stored transposed: (in, hidden).
    w0 = (1.0 + 0.01 * jax.random.normal(k0, (in_channels, hidden_dim))).astype(jnp.float32)
    b0 = jnp.zeros((hidden_dim,), jnp.float32)
    gamma = jnp.ones((hidden_dim,), jnp.float32)
    beta = jnp.zeros((hidden_dim,), jnp.float32)
    # fc.weight transposed: (hidden, num_classes).
    w1 = (1.0 + 0.01 * jax.random.normal(k1, (hidden_dim, num_classes))).astype(jnp.float32)
    b1 = jnp.zeros((num_classes,), jnp.float32)
    return (w0, b0, gamma, beta, w1, b1)


def reference_forward(x, params):
    """Pure-JAX reference using the same bf16-operand / f32-accumulate matmuls."""
    w0, b0, gamma, beta, w1, b1 = params
    h = jnp.dot(x.astype(jnp.bfloat16), w0.astype(jnp.bfloat16),
                preferred_element_type=jnp.float32) + b0
    mean = jnp.mean(h, axis=0, keepdims=True)
    var = jnp.mean((h - mean) ** 2, axis=0, keepdims=True)
    h = (h - mean) * jax.lax.rsqrt(var + BN_EPS) * gamma + beta
    h = jnp.maximum(h, 0.0)
    logits = jnp.dot(h.astype(jnp.bfloat16), w1.astype(jnp.bfloat16),
                     preferred_element_type=jnp.float32) + b1
    return jax.nn.log_softmax(logits, axis=-1)


# Note: only the default softmax=True (log_softmax) head variant is implemented.

if __name__ == "__main__":
    B, in_channels, hidden_dim, num_classes = 8, 32, 32, 10

    key = jax.random.PRNGKey(0)
    kx, kp = jax.random.split(key)
    x = jax.random.normal(kx, (B, in_channels), dtype=jnp.float32)
    params = init_params(kp, in_channels, hidden_dim, num_classes)

    out = linear_cls_forward(x, params)
    out = jax.block_until_ready(out)

    # sanity: shape, probability-space row sums ~ 1, and agreement with reference
    assert out.shape == (B, num_classes)
    row_sums = jnp.sum(jnp.exp(out), axis=-1)
    assert bool(jnp.all(jnp.abs(row_sums - 1.0) < 1e-4))

    ref = reference_forward(x, params)
    assert bool(jnp.all(jnp.abs(out - ref) < 5e-2))

    print("KERNEL_OK")
</pallas_src>

<mosaic_0001>
module attributes {stable_mosaic.version = 11 : i64} {
  func.func @linear_cls_kernel(%arg0: i32, %arg1: i32, %arg2: memref<8x128xf32, #tpu.memory_space<vmem>>, %arg3: memref<128x128xbf16, #tpu.memory_space<vmem>>, %arg4: memref<1x128xf32, #tpu.memory_space<vmem>>, %arg5: memref<1x128xf32, #tpu.memory_space<vmem>>, %arg6: memref<1x128xf32, #tpu.memory_space<vmem>>, %arg7: memref<128x128xbf16, #tpu.memory_space<vmem>>, %arg8: memref<1x128xf32, #tpu.memory_space<vmem>>, %arg9: memref<8x128xf32, #tpu.memory_space<vmem>>, %arg10: memref<1x128xf32, #tpu.memory_space<vmem>>, %arg11: memref<1x128xf32, #tpu.memory_space<vmem>>) attributes {dimension_semantics = [#tpu.dimension_semantics<arbitrary>, #tpu.dimension_semantics<arbitrary>], iteration_bounds = array<i64: 2, 1>, scalar_prefetch = 0 : i64, scratch_operands = 2 : i64, tpu.core_type = #tpu.core_type<tc>, window_params = [{transform_indices = @transform_0, window_bounds = array<i64: 8, 128>}, {pipeline_mode = #tpu.pipeline_mode<synchronous>, transform_indices = @transform_1, window_bounds = array<i64: 128, 128>}, {pipeline_mode = #tpu.pipeline_mode<synchronous>, transform_indices = @transform_2, window_bounds = array<i64: 1, 128>}, {pipeline_mode = #tpu.pipeline_mode<synchronous>, transform_indices = @transform_3, window_bounds = array<i64: 1, 128>}, {pipeline_mode = #tpu.pipeline_mode<synchronous>, transform_indices = @transform_4, window_bounds = array<i64: 1, 128>}, {pipeline_mode = #tpu.pipeline_mode<synchronous>, transform_indices = @transform_5, window_bounds = array<i64: 128, 128>}, {pipeline_mode = #tpu.pipeline_mode<synchronous>, transform_indices = @transform_6, window_bounds = array<i64: 1, 128>}, {transform_indices = @transform_7, window_bounds = array<i64: 8, 128>}]} {
    %c0 = arith.constant 0 : index
    %c0_0 = arith.constant 0 : index
    %0 = vector.load %arg2[%c0, %c0_0] : memref<8x128xf32, #tpu.memory_space<vmem>>, vector<8x128xf32>
    %1 = arith.truncf %0 : vector<8x128xf32> to vector<8x128xbf16>
    %c0_1 = arith.constant 0 : index
    %c0_2 = arith.constant 0 : index
    %2 = vector.load %arg3[%c0_1, %c0_2] : memref<128x128xbf16, #tpu.memory_space<vmem>>, vector<128x128xbf16>
    %cst = arith.constant dense<0.000000e+00> : vector<8x128xf32>
    %3 = tpu.matmul %1, %2, %cst {dimension_numbers = #tpu.dot_dimension_numbers<[1], [0], [0], [1], [0, 0, 1, 1], [], []>} : vector<8x128xbf16>, vector<128x128xbf16>, vector<8x128xf32> -> vector<8x128xf32>
    %c0_3 = arith.constant 0 : index
    %c0_4 = arith.constant 0 : index
    %4 = vector.load %arg4[%c0_3, %c0_4] : memref<1x128xf32, #tpu.memory_space<vmem>>, vector<1x128xf32>
    %5 = vector.broadcast %4 : vector<1x128xf32> to vector<8x128xf32>
    %6 = arith.addf %3, %5 : vector<8x128xf32>
    %c0_i32 = arith.constant 0 : i32
    %7 = arith.cmpi eq, %arg0, %c0_i32 : i32
    %8 = arith.extui %7 : i1 to i32
    %c0_i32_5 = arith.constant 0 : i32
    %9 = arith.cmpi ne, %8, %c0_i32_5 : i32
    scf.if %9 {
      %c0_i32_7 = arith.constant 0 : i32
      %13 = arith.cmpi eq, %arg1, %c0_i32_7 : i32
      %14 = arith.extui %13 : i1 to i32
      %c0_i32_8 = arith.constant 0 : i32
      %15 = arith.cmpi ne, %14, %c0_i32_8 : i32
      scf.if %15 {
        %cst_21 = arith.constant 0.000000e+00 : f32
        %35 = vector.broadcast %cst_21 : f32 to vector<1x128xf32>
        %c0_22 = arith.constant 0 : index
        %c0_23 = arith.constant 0 : index
        %36 = vector.load %arg10[%c0_22, %c0_23] : memref<1x128xf32, #tpu.memory_space<vmem>>, vector<1x128xf32>
        tpu.vector_store %arg10[%c0_22, %c0_23], %35 {strides = array<i32>} : memref<1x128xf32, #tpu.memory_space<vmem>>, vector<1x128xf32>,
        %cst_24 = arith.constant 0.000000e+00 : f32
        %37 = vector.broadcast %cst_24 : f32 to vector<1x128xf32>
        %c0_25 = arith.constant 0 : index
        %c0_26 = arith.constant 0 : index
        %38 = vector.load %arg11[%c0_25, %c0_26] : memref<1x128xf32, #tpu.memory_space<vmem>>, vector<1x128xf32>
        tpu.vector_store %arg11[%c0_25, %c0_26], %37 {strides = array<i32>} : memref<1x128xf32, #tpu.memory_space<vmem>>, vector<1x128xf32>,
      } else {
      }
      %16 = tpu.iota {dimensions = array<i32: 0>} : vector<8x128xi32>
      %c8_i32 = arith.constant 8 : i32
      %17 = arith.muli %arg1, %c8_i32 : i32
      %18 = vector.broadcast %17 : i32 to vector<8x128xi32>
      %19 = arith.addi %16, %18 : vector<8x128xi32>
      %c8_i32_9 = arith.constant 8 : i32
      %20 = vector.broadcast %c8_i32_9 : i32 to vector<8x128xi32>
      %21 = arith.cmpi slt, %19, %20 : vector<8x128xi32>
      %cst_10 = arith.constant 0.000000e+00 : f32
      %22 = vector.broadcast %cst_10 : f32 to vector<8x128xf32>
      %23 = arith.select %21, %6, %22 : vector<8x128xi1>, vector<8x128xf32>
      %c0_11 = arith.constant 0 : index
      %c0_12 = arith.constant 0 : index
      %24 = vector.load %arg10[%c0_11, %c0_12] : memref<1x128xf32, #tpu.memory_space<vmem>>, vector<1x128xf32>
      %cst_13 = arith.constant dense<0.000000e+00> : vector<128xf32>
      %25 = vector.multi_reduction <add>, %23, %cst_13 [0] : vector<8x128xf32> to vector<128xf32>
      %26 = vector.shape_cast %25 : vector<128xf32> to vector<1x128xf32>
      %27 = arith.addf %24, %26 : vector<1x128xf32>
      %c0_14 = arith.constant 0 : index
      %c0_15 = arith.constant 0 : index
      %28 = vector.load %arg10[%c0_14, %c0_15] : memref<1x128xf32, #tpu.memory_space<vmem>>, vector<1x128xf32>
      tpu.vector_store %arg10[%c0_14, %c0_15], %27 {strides = array<i32>} : memref<1x128xf32, #tpu.memory_space<vmem>>, vector<1x128xf32>,
      %c0_16 = arith.constant 0 : index
      %c0_17 = arith.constant 0 : index
      %29 = vector.load %arg11[%c0_16, %c0_17] : memref<1x128xf32, #tpu.memory_space<vmem>>, vector<1x128xf32>
      %30 = arith.mulf %23, %23 : vector<8x128xf32>
      %cst_18 = arith.constant dense<0.000000e+00> : vector<128xf32>
      %31 = vector.multi_reduction <add>, %30, %cst_18 [0] : vector<8x128xf32> to vector<128xf32>
      %32 = vector.shape_cast %31 : vector<128xf32> to vector<1x128xf32>
      %33 = arith.addf %29, %32 : vector<1x128xf32>
      %c0_19 = arith.constant 0 : index
      %c0_20 = arith.constant 0 : index
      %34 = vector.load %arg11[%c0_19, %c0_20] : memref<1x128xf32, #tpu.memory_space<vmem>>, vector<1x128xf32>
      tpu.vector_store %arg11[%c0_19, %c0_20], %33 {strides = array<i32>} : memref<1x128xf32, #tpu.memory_space<vmem>>, vector<1x128xf32>,
    } else {
    }
    %c1_i32 = arith.constant 1 : i32
    %10 = arith.cmpi eq, %arg0, %c1_i32 : i32
    %11 = arith.extui %10 : i1 to i32
    %c0_i32_6 = arith.constant 0 : i32
    %12 = arith.cmpi ne, %11, %c0_i32_6 : i32
    scf.if %12 {
      %c0_7 = arith.constant 0 : index
      %c0_8 = arith.constant 0 : index
      %13 = vector.load %arg10[%c0_7, %c0_8] : memref<1x128xf32, #tpu.memory_space<vmem>>, vector<1x128xf32>
      %cst_9 = arith.constant 1.250000e-01 : f32
      %14 = vector.broadcast %cst_9 : f32 to vector<1x128xf32>
      %15 = arith.mulf %13, %14 : vector<1x128xf32>
      %c0_10 = arith.constant 0 : index
      %c0_11 = arith.constant 0 : index
      %16 = vector.load %arg11[%c0_10, %c0_11] : memref<1x128xf32, #tpu.memory_space<vmem>>, vector<1x128xf32>
      %cst_12 = arith.constant 1.250000e-01 : f32
      %17 = vector.broadcast %cst_12 : f32 to vector<1x128xf32>
      %18 = arith.mulf %16, %17 : vector<1x128xf32>
      %19 = arith.mulf %15, %15 : vector<1x128xf32>
      %20 = arith.subf %18, %19 : vector<1x128xf32>
      %cst_13 = arith.constant 0.000000e+00 : f32
      %21 = vector.broadcast %cst_13 : f32 to vector<1x128xf32>
      %22 = arith.maximumf %20, %21 : vector<1x128xf32>
      %23 = vector.broadcast %15 : vector<1x128xf32> to vector<8x128xf32>
      %24 = arith.subf %6, %23 : vector<8x128xf32>
      %cst_14 = arith.constant 9.99999974E-6 : f32
      %25 = vector.broadcast %cst_14 : f32 to vector<1x128xf32>
      %26 = arith.addf %22, %25 : vector<1x128xf32>
      %27 = math.rsqrt %26 : vector<1x128xf32>
      %28 = vector.broadcast %27 : vector<1x128xf32> to vector<8x128xf32>
      %29 = arith.mulf %24, %28 : vector<8x128xf32>
      %c0_15 = arith.constant 0 : index
      %c0_16 = arith.constant 0 : index
      %30 = vector.load %arg5[%c0_15, %c0_16] : memref<1x128xf32, #tpu.memory_space<vmem>>, vector<1x128xf32>
      %31 = vector.broadcast %30 : vector<1x128xf32> to vector<8x128xf32>
      %32 = arith.mulf %29, %31 : vector<8x128xf32>
      %c0_17 = arith.constant 0 : index
      %c0_18 = arith.constant 0 : index
      %33 = vector.load %arg6[%c0_17, %c0_18] : memref<1x128xf32, #tpu.memory_space<vmem>>, vector<1x128xf32>
      %34 = vector.broadcast %33 : vector<1x128xf32> to vector<8x128xf32>
      %35 = arith.addf %32, %34 : vector<8x128xf32>
      %cst_19 = arith.constant 0.000000e+00 : f32
      %36 = vector.broadcast %cst_19 : f32 to vector<8x128xf32>
      %37 = arith.maximumf %35, %36 : vector<8x128xf32>
      %38 = arith.truncf %37 : vector<8x128xf32> to vector<8x128xbf16>
      %c0_20 = arith.constant 0 : index
      %c0_21 = arith.constant 0 : index
      %39 = vector.load %arg7[%c0_20, %c0_21] : memref<128x128xbf16, #tpu.memory_space<vmem>>, vector<128x128xbf16>
      %cst_22 = arith.constant dense<0.000000e+00> : vector<8x128xf32>
      %40 = tpu.matmul %38, %39, %cst_22 {dimension_numbers = #tpu.dot_dimension_numbers<[1], [0], [0], [1], [0, 0, 1, 1], [], []>} : vector<8x128xbf16>, vector<128x128xbf16>, vector<8x128xf32> -> vector<8x128xf32>
      %c0_23 = arith.constant 0 : index
      %c0_24 = arith.constant 0 : index
      %41 = vector.load %arg8[%c0_23, %c0_24] : memref<1x128xf32, #tpu.memory_space<vmem>>, vector<1x128xf32>
      %42 = vector.broadcast %41 : vector<1x128xf32> to vector<8x128xf32>
      %43 = arith.addf %40, %42 : vector<8x128xf32>
      %cst_25 = arith.constant dense<0xFF800000> : vector<8xf32>
      %44 = vector.multi_reduction <maximumf>, %43, %cst_25 [1] : vector<8x128xf32> to vector<8xf32>
      %45 = vector.shape_cast %44 : vector<8xf32> to vector<8x1xf32>
      %46 = vector.broadcast %45 : vector<8x1xf32> to vector<8x128xf32>
      %47 = arith.subf %43, %46 : vector<8x128xf32>
      %48 = math.exp %47 : vector<8x128xf32>
      %cst_26 = arith.constant dense<0.000000e+00> : vector<8xf32>
      %49 = vector.multi_reduction <add>, %48, %cst_26 [1] : vector<8x128xf32> to vector<8xf32>
      %50 = vector.shape_cast %49 : vector<8xf32> to vector<8x1xf32>
      %51 = math.log %50 : vector<8x1xf32>
      %52 = vector.broadcast %51 : vector<8x1xf32> to vector<8x128xf32>
      %53 = arith.subf %47, %52 : vector<8x128xf32>
      %c0_27 = arith.constant 0 : index
      %c0_28 = arith.constant 0 : index
      %54 = vector.load %arg9[%c0_27, %c0_28] : memref<8x128xf32, #tpu.memory_space<vmem>>, vector<8x128xf32>
      tpu.vector_store %arg9[%c0_27, %c0_28], %53 {strides = array<i32>} : memref<8x128xf32, #tpu.memory_space<vmem>>, vector<8x128xf32>,
    } else {
    }
    return
  }
  func.func @transform_0(%arg0: i32, %arg1: i32) -> (i32, i32) {
    %c0_i32 = arith.constant 0 : i32
    %c0_i32_0 = arith.constant 0 : i32
    return %arg1, %c0_i32 : i32, i32
  }
  func.func @transform_1(%arg0: i32, %arg1: i32) -> (i32, i32) {
    %c0_i32 = arith.constant 0 : i32
    %c0_i32_0 = arith.constant 0 : i32
    %c0_i32_1 = arith.constant 0 : i32
    return %c0_i32, %c0_i32_0 : i32, i32
  }
  func.func @transform_2(%arg0: i32, %arg1: i32) -> (i32, i32) {
    %c0_i32 = arith.constant 0 : i32
    %c0_i32_0 = arith.constant 0 : i32
    %c0_i32_1 = arith.constant 0 : i32
    return %c0_i32, %c0_i32_0 : i32, i32
  }
  func.func @transform_3(%arg0: i32, %arg1: i32) -> (i32, i32) {
    %c0_i32 = arith.constant 0 : i32
    %c0_i32_0 = arith.constant 0 : i32
    %c0_i32_1 = arith.constant 0 : i32
    return %c0_i32, %c0_i32_0 : i32, i32
  }
  func.func @transform_4(%arg0: i32, %arg1: i32) -> (i32, i32) {
    %c0_i32 = arith.constant 0 : i32
    %c0_i32_0 = arith.constant 0 : i32
    %c0_i32_1 = arith.constant 0 : i32
    return %c0_i32, %c0_i32_0 : i32, i32
  }
  func.func @transform_5(%arg0: i32, %arg1: i32) -> (i32, i32) {
    %c0_i32 = arith.constant 0 : i32
    %c0_i32_0 = arith.constant 0 : i32
    %c0_i32_1 = arith.constant 0 : i32
    return %c0_i32, %c0_i32_0 : i32, i32
  }
  func.func @transform_6(%arg0: i32, %arg1: i32) -> (i32, i32) {
    %c0_i32 = arith.constant 0 : i32
    %c0_i32_0 = arith.constant 0 : i32
    %c0_i32_1 = arith.constant 0 : i32
    return %c0_i32, %c0_i32_0 : i32, i32
  }
  func.func @transform_7(%arg0: i32, %arg1: i32) -> (i32, i32) {
    %c0_i32 = arith.constant 0 : i32
    %c0_i32_0 = arith.constant 0 : i32
    return %arg1, %c0_i32 : i32, i32
  }
}

</mosaic_0001>

<llo_original>
// kernel: linear_cls_forward.1
$region0: #{linear_cls_forward.1}
  #allocation0 [shape = 'u32[]', space=smem, size = 0x4, offset = 0x4, fixed_abs, tag = 'smem constant byte address 0x4 - core index']
  #allocation1 [shape = 'u32[144,128]{1,0:T(1,128)}', space=vmem, size = 0x12000, scoped, tag = 'internal scratch']
  #allocation2 [shape = 'f32[1,128]{1,0:T(1,128)}', space=vmem, size = 0x200, scoped, tag = 'scratch operand']
  #allocation3 [shape = 'f32[1,128]{1,0:T(1,128)}', space=vmem, size = 0x200, scoped, tag = 'scratch operand']
  %s0 = inlined_call_operand.vmem [shape: f32[8,128], index: 0, kind: input, shape index: {}]
  %s1 = inlined_call_operand.vmem [shape: bf16[128,128], index: 1, kind: input, shape index: {}]
  %s2 = inlined_call_operand.vmem [shape: f32[1,128], index: 2, kind: input, shape index: {}]
  %s3 = inlined_call_operand.vmem [shape: f32[1,128], index: 3, kind: input, shape index: {}]
  %s4 = inlined_call_operand.vmem [shape: f32[1,128], index: 4, kind: input, shape index: {}]
  %s5 = inlined_call_operand.vmem [shape: bf16[128,128], index: 5, kind: input, shape index: {}]
  %s6 = inlined_call_operand.vmem [shape: f32[1,128], index: 6, kind: input, shape index: {}]
  %s7 = inlined_call_operand.hbm [shape: f32[8,128], index: 7, kind: output, shape index: {}]
  %s8 = sld [smem:[#allocation0]]
  $region73: #{linear_cls_forward.1} parent=0
    _
  %s10 = ssub.s32 1, %s8
  %s11 = scalar_select 0, %s10, %s8
  $region1: #{linear_cls_forward.1} parent=0
    #allocation4 [shape = 'u8[4096]{0}', space=vmem, size = 0x1000, scoped, tag = 'output window, operand 0, single buffered']
    #allocation5 [shape = 's32[2]{0}', space=sflag, size = 0x8, scoped, tag = 'scoped memory for linear_cls_forward.1']
    %12 = vsyncpa [#allocation5], 0
    loop: start=0, step=1, limit=4
    $region2: #{linear_cls_forward.1} parent=1 // loop_pre_header
      _
    $region3: #{linear_cls_forward.1} parent=1 // loop_header
      %s14 = sphi 0, %s18
      %p15 = scmp.ge.s32.totalorder %s14, 4
      %s21 = sphi 0, %s33
      %s22 = sphi 0, %s29
      %s23 = sphi 0, %s21
      %s24 = sphi 0, %s22
      %s25 = sphi 0, %s23
      %s26 = sphi 0, %s24
      %s36 = sphi 0, %s38
      %s39 = sphi 0, %s36
      %s40 = sphi 0, %s39
      %s56 = sphi 0, %s40
      %s60 = sphi 0, %s60
      %s62 = sphi 0, %s60
      %s63 = sphi 0, %s62
      %s77 = sphi 0, %s63
      %s81 = sphi 0, %s81
      %s83 = sphi 0, %s81
      %s84 = sphi 0, %s83
      %s98 = sphi 0, %s84
      %s102 = sphi 0, %s102
      %s104 = sphi 0, %s102
      %s105 = sphi 0, %s104
      %s119 = sphi 0, %s105
      %s123 = sphi 0, %s123
      %s125 = sphi 0, %s123
      %s126 = sphi 0, %s125
      %s140 = sphi 0, %s126
      %s144 = sphi 0, %s144
      %s146 = sphi 0, %s144
      %s147 = sphi 0, %s146
      %s161 = sphi 0, %s147
      %s165 = sphi 0, %s165
      %s167 = sphi 0, %s165
      %s168 = sphi 0, %s167
      %s182 = sphi 0, %s168
      %s188 = sphi 0, %s190
      %s191 = sphi 0, %s188
      %s192 = sphi 0, %s191
      %s208 = sphi 0, %s192
    $region4: #{linear_cls_forward.1} parent=1 // loop_header_branch
      %17 = sbr.rel (%p15) target = $region8
    $region5: #{linear_cls_forward.1} parent=1 // loop_body
      %s19 = ssub.s32 %s14, 1
      %s20 = ssub.s32 %s14, 2
      %s27 = sadd.s32 1, %s22
      %p28 = scmp.ge.s32.totalorder %s27, 1
      %s29 = scalar_select %p28, 0, %s27
      %s30 = sadd.s32 1, %s21
      %s31 = scalar_select %p28, %s30, %s21
      %p32 = scmp.ge.s32.totalorder %s31, 2
      %s33 = scalar_select %p32, 0, %s31
      %s34 = ssub.s32 %s22, %s29
      %p35 = scmp.eq.s32.totalorder %s34, 0
      %s37 = sadd.s32 %s36, 1
      %s38 = scalar_select %p35, %s36, %s37
      %p41 = pneg %p35
      %p42 = scmp.eq.s32.totalorder %s14, 1
      %p43 = por %p41, %p42
      %p44 = scmp.ne.s32.totalorder %s36, %s39
      %p45 = scmp.eq.s32.totalorder %s14, 0
      %p46 = por %p44, %p45
      %p47 = scmp.ne.s32.totalorder %s36, %s39
      %p48 = scmp.eq.s32.totalorder %s19, 1
      %p49 = por %p47, %p48
      %p50 = scmp.ne.s32.totalorder %s39, %s40
      %p51 = scmp.eq.s32.totalorder %s19, 0
      %p52 = por %p50, %p51
      %p53 = scmp.ne.s32.totalorder %s39, %s40
      %p54 = scmp.eq.s32.totalorder %s20, 1
      %p55 = por %p53, %p54
      %p57 = scmp.ne.s32.totalorder %s40, %s56
      %p58 = scmp.eq.s32.totalorder %s20, 0
      %p59 = por %p57, %p58
      %s61 = sadd.s32 %s60, 1
      %p64 = scmp.eq.s32.totalorder %s14, 1
      %p65 = scmp.ne.s32.totalorder %s60, %s62
      %p66 = scmp.eq.s32.totalorder %s14, 0
      %p67 = por %p65, %p66
      %p68 = scmp.ne.s32.totalorder %s60, %s62
      %p69 = scmp.eq.s32.totalorder %s19, 1
      %p70 = por %p68, %p69
      %p71 = scmp.ne.s32.totalorder %s62, %s63
      %p72 = scmp.eq.s32.totalorder %s19, 0
      %p73 = por %p71, %p72
      %p74 = scmp.ne.s32.totalorder %s62, %s63
      %p75 = scmp.eq.s32.totalorder %s20, 1
      %p76 = por %p74, %p75
      %p78 = scmp.ne.s32.totalorder %s63, %s77
      %p79 = scmp.eq.s32.totalorder %s20, 0
      %p80 = por %p78, %p79
      %s82 = sadd.s32 %s81, 1
      %p85 = scmp.eq.s32.totalorder %s14, 1
      %p86 = scmp.ne.s32.totalorder %s81, %s83
      %p87 = scmp.eq.s32.totalorder %s14, 0
      %p88 = por %p86, %p87
      %p89 = scmp.ne.s32.totalorder %s81, %s83
      %p90 = scmp.eq.s32.totalorder %s19, 1
      %p91 = por %p89, %p90
      %p92 = scmp.ne.s32.totalorder %s83, %s84
      %p93 = scmp.eq.s32.totalorder %s19, 0
      %p94 = por %p92, %p93
      %p95 = scmp.ne.s32.totalorder %s83, %s84
      %p96 = scmp.eq.s32.totalorder %s20, 1
      %p97 = por %p95, %p96
      %p99 = scmp.ne.s32.totalorder %s84, %s98
      %p100 = scmp.eq.s32.totalorder %s20, 0
      %p101 = por %p99, %p100
      %s103 = sadd.s32 %s102, 1
      %p106 = scmp.eq.s32.totalorder %s14, 1
      %p107 = scmp.ne.s32.totalorder %s102, %s104
      %p108 = scmp.eq.s32.totalorder %s14, 0
      %p109 = por %p107, %p108
      %p110 = scmp.ne.s32.totalorder %s102, %s104
      %p111 = scmp.eq.s32.totalorder %s19, 1
      %p112 = por %p110, %p111
      %p113 = scmp.ne.s32.totalorder %s104, %s105
      %p114 = scmp.eq.s32.totalorder %s19, 0
      %p115 = por %p113, %p114
      %p116 = scmp.ne.s32.totalorder %s104, %s105
      %p117 = scmp.eq.s32.totalorder %s20, 1
      %p118 = por %p116, %p117
      %p120 = scmp.ne.s32.totalorder %s105, %s119
      %p121 = scmp.eq.s32.totalorder %s20, 0
      %p122 = por %p120, %p121
      %s124 = sadd.s32 %s123, 1
      %p127 = scmp.eq.s32.totalorder %s14, 1
      %p128 = scmp.ne.s32.totalorder %s123, %s125
      %p129 = scmp.eq.s32.totalorder %s14, 0
      %p130 = por %p128, %p129
      %p131 = scmp.ne.s32.totalorder %s123, %s125
      %p132 = scmp.eq.s32.totalorder %s19, 1
      %p133 = por %p131, %p132
      %p134 = scmp.ne.s32.totalorder %s125, %s126
      %p135 = scmp.eq.s32.totalorder %s19, 0
      %p136 = por %p134, %p135
      %p137 = scmp.ne.s32.totalorder %s125, %s126
      %p138 = scmp.eq.s32.totalorder %s20, 1
      %p139 = por %p137, %p138
      %p141 = scmp.ne.s32.totalorder %s126, %s140
      %p142 = scmp.eq.s32.totalorder %s20, 0
      %p143 = por %p141, %p142
      %s145 = sadd.s32 %s144, 1
      %p148 = scmp.eq.s32.totalorder %s14, 1
      %p149 = scmp.ne.s32.totalorder %s144, %s146
      %p150 = scmp.eq.s32.totalorder %s14, 0
      %p151 = por %p149, %p150
      %p152 = scmp.ne.s32.totalorder %s144, %s146
      %p153 = scmp.eq.s32.totalorder %s19, 1
      %p154 = por %p152, %p153
      %p155 = scmp.ne.s32.totalorder %s146, %s147
      %p156 = scmp.eq.s32.totalorder %s19, 0
      %p157 = por %p155, %p156
      %p158 = scmp.ne.s32.totalorder %s146, %s147
      %p159 = scmp.eq.s32.totalorder %s20, 1
      %p160 = por %p158, %p159
      %p162 = scmp.ne.s32.totalorder %s147, %s161
      %p163 = scmp.eq.s32.totalorder %s20, 0
      %p164 = por %p162, %p163
      %s166 = sadd.s32 %s165, 1
      %p169 = scmp.eq.s32.totalorder %s14, 1
      %p170 = scmp.ne.s32.totalorder %s165, %s167
      %p171 = scmp.eq.s32.totalorder %s14, 0
      %p172 = por %p170, %p171
      %p173 = scmp.ne.s32.totalorder %s165, %s167
      %p174 = scmp.eq.s32.totalorder %s19, 1
      %p175 = por %p173, %p174
      %p176 = scmp.ne.s32.totalorder %s167, %s168
      %p177 = scmp.eq.s32.totalorder %s19, 0
      %p178 = por %p176, %p177
      %p179 = scmp.ne.s32.totalorder %s167, %s168
      %p180 = scmp.eq.s32.totalorder %s20, 1
      %p181 = por %p179, %p180
      %p183 = scmp.ne.s32.totalorder %s168, %s182
      %p184 = scmp.eq.s32.totalorder %s20, 0
      %p185 = por %p183, %p184
      %s186 = ssub.s32 %s22, %s29
      %p187 = scmp.eq.s32.totalorder %s186, 0
      %s189 = sadd.s32 %s188, 1
      %s190 = scalar_select %p187, %s188, %s189
      %p193 = pneg %p187
      %p194 = scmp.eq.s32.totalorder %s14, 1
      %p195 = por %p193, %p194
      %p196 = scmp.ne.s32.totalorder %s188, %s191
      %p197 = scmp.eq.s32.totalorder %s14, 0
      %p198 = por %p196, %p197
      %p199 = scmp.ne.s32.totalorder %s188, %s191
      %p200 = scmp.eq.s32.totalorder %s19, 1
      %p201 = por %p199, %p200
      %p202 = scmp.ne.s32.totalorder %s191, %s192
      %p203 = scmp.eq.s32.totalorder %s19, 0
      %p204 = por %p202, %p203
      %p205 = scmp.ne.s32.totalorder %s191, %s192
      %p206 = scmp.eq.s32.totalorder %s20, 1
      %p207 = por %p205, %p206
      %p209 = scmp.ne.s32.totalorder %s192, %s208
      %p210 = scmp.eq.s32.totalorder %s20, 0
      %p211 = por %p209, %p210
      %p212 = scmp.le.s32.totalorder 1, %s14
      %p213 = scmp.lt.s32.totalorder %s14, 3
      %p214 = pnand %p212, %p213
      %p215 = pneg %p214
      // Predicated region
      $region9: #{linear_cls_forward.1} parent=5 // pred_check
        _
      $region10: #{linear_cls_forward.1} parent=5 // pred_check_branch
        %217 = sbr.rel (%p214) target = $region12
      $region11: #{linear_cls_forward.1} parent=5 // pred_region
        %s218 = ssub.s32 %s14, 1
        // Predicated region
        $region13: #{linear_cls_forward.1} parent=11 // pred_check
          %p219 = pneg %p52
        $region14: #{linear_cls_forward.1} parent=11 // pred_check_branch
          %221 = sbr.rel (%p219) target = $region16
        $region15: #{linear_cls_forward.1} parent=11 // pred_region
          %p222 = scmp.lt.s32.totalorder %s24, 0
          %s223 = scalar_select %p222, %s24, 0
          %s224 = smul.addr %s223, 8
          %s225 = scalar_lea.vmem %s0, %s224
        $region16: #{linear_cls_forward.1} parent=11 // pred_fallthru
          _
        // Predicated region
        $region17: #{linear_cls_forward.1} parent=11 // pred_check
          %p226 = pneg %p73
        $region18: #{linear_cls_forward.1} parent=11 // pred_check_branch
          %228 = sbr.rel (%p226) target = $region20
        $region19: #{linear_cls_forward.1} parent=11 // pred_region
          _
        $region20: #{linear_cls_forward.1} parent=11 // pred_fallthru
          _
        // Predicated region
        $region21: #{linear_cls_forward.1} parent=11 // pred_check
          %p229 = pneg %p94
        $region22: #{linear_cls_forward.1} parent=11 // pred_check_branch
          %231 = sbr.rel (%p229) target = $region24
        $region23: #{linear_cls_forward.1} parent=11 // pred_region
          _
        $region24: #{linear_cls_forward.1} parent=11 // pred_fallthru
          _
        // Predicated region
        $region25: #{linear_cls_forward.1} parent=11 // pred_check
          %p232 = pneg %p115
        $region26: #{linear_cls_forward.1} parent=11 // pred_check_branch
          %234 = sbr.rel (%p232) target = $region28
        $region27: #{linear_cls_forward.1} parent=11 // pred_region
          _
        $region28: #{linear_cls_forward.1} parent=11 // pred_fallthru
          _
        // Predicated region
        $region29: #{linear_cls_forward.1} parent=11 // pred_check
          %p235 = pneg %p136
        $region30: #{linear_cls_forward.1} parent=11 // pred_check_branch
          %237 = sbr.rel (%p235) target = $region32
        $region31: #{linear_cls_forward.1} parent=11 // pred_region
          _
        $region32: #{linear_cls_forward.1} parent=11 // pred_fallthru
          _
        // Predicated region
        $region33: #{linear_cls_forward.1} parent=11 // pred_check
          %p238 = pneg %p157
        $region34: #{linear_cls_forward.1} parent=11 // pred_check_branch
          %240 = sbr.rel (%p238) target = $region36
        $region35: #{linear_cls_forward.1} parent=11 // pred_region
          _
        $region36: #{linear_cls_forward.1} parent=11 // pred_fallthru
          _
        // Predicated region
        $region37: #{linear_cls_forward.1} parent=11 // pred_check
          %p241 = pneg %p178
        $region38: #{linear_cls_forward.1} parent=11 // pred_check_branch
          %243 = sbr.rel (%p241) target = $region40
        $region39: #{linear_cls_forward.1} parent=11 // pred_region
          _
        $region40: #{linear_cls_forward.1} parent=11 // pred_fallthru
          _
      $region12: #{linear_cls_forward.1} parent=5 // pred_fallthru
        _
      %p244 = scmp.lt.s32.totalorder %s14, 2
      // Predicated region
      $region41: #{linear_cls_forward.1} parent=5 // pred_check
        %p245 = pneg %p244
      $region42: #{linear_cls_forward.1} parent=5 // pred_check_branch
        %247 = sbr.rel (%p245) target = $region44
      $region43: #{linear_cls_forward.1} parent=5 // pred_region
        _
      $region44: #{linear_cls_forward.1} parent=5 // pred_fallthru
        _
      %p248 = scmp.le.s32.totalorder 1, %s14
      %p249 = scmp.lt.s32.totalorder %s14, 3
      %p250 = pnand %p248, %p249
      %p251 = pneg %p250
      // Predicated region
      $region45: #{linear_cls_forward.1} parent=5 // pred_check
        _
      $region46: #{linear_cls_forward.1} parent=5 // pred_check_branch
        %253 = sbr.rel (%p250) target = $region48
      $region47: #{linear_cls_forward.1} parent=5 // pred_region
        %s254 = ssub.s32 %s14, 1
        %p255 = scmp.lt.s32.totalorder %s24, 0
        %s256 = scalar_select %p255, %s24, 0
        %s257 = smul.addr %s256, 8
        %s258 = scalar_lea.vmem %s0, %s257
        %p259 = pneg %p52
        %p260 = pneg %p49
        %p261 = pneg %p73
        %p262 = pneg %p70
        %p263 = pneg %p94
        %p264 = pneg %p91
        %p265 = pneg %p115
        %p266 = pneg %p112
        %p267 = pneg %p136
        %p268 = pneg %p133
        %p269 = pneg %p157
        %p270 = pneg %p154
        %p271 = pneg %p178
        %p272 = pneg %p175
        %p273 = pneg %p204
        %p274 = pneg %p201
        %p275 = scmp.lt.s32.totalorder %s24, 0
        %s276 = scalar_select %p275, %s24, 0
        %s277 = smul.addr %s276, 8
        %s278 = scalar_lea.vmem %s0, %s277
        %v280 = vld [vmem:[%s278] sm:$0xff]
        %v281 = vpack.c.bf16 %v280, %v280
        %v282 = vld [vmem:[%s1] sm:$0xf]
        %v283 = vld [vmem:[%s1 + $0x4] sm:$0xf]
        %v284 = vld [vmem:[%s1 + $0x8] sm:$0xf]
        %v285 = vld [vmem:[%s1 + $0xc] sm:$0xf]
        %v286 = vld [vmem:[%s1 + $0x10] sm:$0xf]
        %v287 = vld [vmem:[%s1 + $0x14] sm:$0xf]
        %v288 = vld [vmem:[%s1 + $0x18] sm:$0xf]
        %v289 = vld [vmem:[%s1 + $0x1c] sm:$0xf]
        %v290 = vld [vmem:[%s1 + $0x20] sm:$0xf]
        %v291 = vld [vmem:[%s1 + $0x24] sm:$0xf]
        %v292 = vld [vmem:[%s1 + $0x28] sm:$0xf]
        %v293 = vld [vmem:[%s1 + $0x2c] sm:$0xf]
        %v294 = vld [vmem:[%s1 + $0x30] sm:$0xf]
        %v295 = vld [vmem:[%s1 + $0x34] sm:$0xf]
        %v296 = vld [vmem:[%s1 + $0x38] sm:$0xf]
        %v297 = vld [vmem:[%s1 + $0x3c] sm:$0xf]
        %v298 = vld [vmem:[%s2] sm:$0x1]
        %v300 = vlaneseq
        %v301 = vshrl.u32 %v300, 7
        %v302 = vsub.s32 0, %v301
        %v303 = vrot.slane %v298, %v302
        %v321 = vunpack.c.l.b16 %v282
        %v322 = vunpack.c.l.b16 %v283
        %v323 = vunpack.c.l.b16 %v284
        %v324 = vunpack.c.l.b16 %v285
        %v325 = vunpack.c.l.b16 %v286
        %v326 = vunpack.c.l.b16 %v287
        %v327 = vunpack.c.l.b16 %v288
        %v328 = vunpack.c.l.b16 %v289
        %v329 = vunpack.c.l.b16 %v290
        %v330 = vunpack.c.l.b16 %v291
        %v331 = vunpack.c.l.b16 %v292
        %v332 = vunpack.c.l.b16 %v293
        %v333 = vunpack.c.l.b16 %v294
        %v334 = vunpack.c.l.b16 %v295
        %v335 = vunpack.c.l.b16 %v296
        %v336 = vunpack.c.l.b16 %v297
        %v337 = vpack.c.b16 %v322, %v321
        %v338 = vpack.c.b16 %v324, %v323
        %v339 = vpack.c.b16 %v326, %v325
        %v340 = vpack.c.b16 %v328, %v327
        %v341 = vpack.c.b16 %v330, %v329
        %v342 = vpack.c.b16 %v332, %v331
        %v343 = vpack.c.b16 %v334, %v333
        %v344 = vpack.c.b16 %v336, %v335
        %353 = vmatprep.subr.bf16.mxu0 0
        %354 = vmatpush1.bf16.msra.mxu0 %v337
        %355 = vmatprep.subr.bf16.mxu0 0
        %356 = vmatpush1.bf16.msra.mxu0 %v338
        %357 = vmatprep.subr.bf16.mxu0 0
        %358 = vmatpush1.bf16.msra.mxu0 %v339
        %359 = vmatprep.subr.bf16.mxu0 0
        %360 = vmatpush1.bf16.msra.mxu0 %v340
        %361 = vmatprep.subr.bf16.mxu0 0
        %362 = vmatpush1.bf16.msra.mxu0 %v341
        %363 = vmatprep.subr.bf16.mxu0 0
        %364 = vmatpush1.bf16.msra.mxu0 %v342
        %365 = vmatprep.subr.bf16.mxu0 0
        %366 = vmatpush1.bf16.msra.mxu0 %v343
        %367 = vmatprep.subr.bf16.mxu0 0
        %368 = vmatpush1.bf16.msra.mxu0 %v344
        %369 = vmatprep.subr.bf16.mxu0 0
        %370 = vmatpush1.bf16.msra.mxu0 0
        %371 = vmatprep.subr.bf16.mxu0 0
        %372 = vmatpush1.bf16.msra.mxu0 0
        %373 = vmatprep.subr.bf16.mxu0 0
        %374 = vmatpush1.bf16.msra.mxu0 0
        %375 = vmatprep.subr.bf16.mxu0 0
        %376 = vmatpush1.bf16.msra.mxu0 0
        %377 = vmatprep.subr.bf16.mxu0 0
        %378 = vmatpush1.bf16.msra.mxu0 0
        %379 = vmatprep.subr.bf16.mxu0 0
        %380 = vmatpush1.bf16.msra.mxu0 0
        %381 = vmatprep.subr.bf16.mxu0 0
        %382 = vmatpush1.bf16.msra.mxu0 0
        %383 = vmatprep.subr.bf16.mxu0 0
        %384 = vmatpush1.bf16.msra.mxu0 0
        %385 = vmatprep.mubr.bf16.mxu0 0
        %386 = vmatmul.mubr.bf16.gmra.mrb[0].mxu0 %v281
        %v387 = vpop.f32.mrb[0].mxu0
        %v388 = vadd.f32 %v303, %v387
        %v389 = vpop.f32.mrb[0].mxu0
        %v390 = vpop.f32.mrb[0].mxu0
        %v391 = vpop.f32.mrb[0].mxu0
        %392 = vdwg.mxu0
        %p393 = scmp.eq.s32.totalorder %s23, 0
        // Predicated region
        $region49: #{linear_cls_forward.1} parent=47 // pred_check
          %p394 = pneg %p393
        $region50: #{linear_cls_forward.1} parent=47 // pred_check_branch
          %396 = sbr.rel (%p394) target = $region52
        $region51: #{linear_cls_forward.1} parent=47 // pred_region
          %p397 = scmp.eq.s32.totalorder %s24, 0
          // Predicated region
          $region53: #{linear_cls_forward.1} parent=51 // pred_check
            %p398 = pneg %p397
          $region54: #{linear_cls_forward.1} parent=51 // pred_check_branch
            %400 = sbr.rel (%p398) target = $region56
          $region55: #{linear_cls_forward.1} parent=51 // pred_region
            %401 = vst [vmem:[#allocation2] sm:$0x1] 0.0
            %402 = vst [vmem:[#allocation3] sm:$0x1] 0.0
          $region56: #{linear_cls_forward.1} parent=51 // pred_fallthru
            _
          %v403 = vlaneseq
          %v404 = vshrl.u32 %v403, 7
          %s405 = smul.u32 %s24, 8
          %v406 = vstv %s405
          %v407 = vadd.s32 %v404, %v406
          %vm408 = vcmp.lt.s32.totalorder %v407, 8
          %v409 = vsel %vm408, %v388, 0.0
          %v410 = vld [vmem:[#allocation2] sm:$0x1]
          %v411 = vrot.slane %v409, 4
          %v412 = vadd.f32 %v409, %v411
          %v413 = vrot.slane %v412, 2
          %v414 = vadd.f32 %v412, %v413
          %v415 = vrot.slane %v414, 1
          %v416 = vadd.f32 %v414, %v415
          %v417 = vadd.f32 %v410, %v416
          %418 = vst [vmem:[#allocation2] sm:$0x1] %v417
          %v419 = vld [vmem:[#allocation3] sm:$0x1]
          %v420 = vmul.f32 %v409, %v409
          %v421 = vrot.slane %v420, 4
          %v422 = vadd.f32 %v420, %v421
          %v423 = vrot.slane %v422, 2
          %v424 = vadd.f32 %v422, %v423
          %v425 = vrot.slane %v424, 1
          %v426 = vadd.f32 %v424, %v425
          %v427 = vadd.f32 %v419, %v426
          %428 = vst [vmem:[#allocation3] sm:$0x1] %v427
        $region52: #{linear_cls_forward.1} parent=47 // pred_fallthru
          _
        %p429 = scmp.eq.s32.totalorder %s23, 1
        // Predicated region
        $region57: #{linear_cls_forward.1} parent=47 // pred_check
          %p430 = pneg %p429
        $region58: #{linear_cls_forward.1} parent=47 // pred_check_branch
          %432 = sbr.rel (%p430) target = $region60
        $region59: #{linear_cls_forward.1} parent=47 // pred_region
          %v433 = vld [vmem:[#allocation2] sm:$0x1]
          %v434 = vmul.f32 %v433, 0.125
          %v435 = vld [vmem:[#allocation3] sm:$0x1]
          %v436 = vmul.f32 %v435, 0.125
          %v437 = vmul.f32 %v434, %v434
          %v438 = vsub.f32 %v436, %v437
          %v439 = vmax.f32 %v438, 0.0
          %v441 = vlaneseq
          %v442 = vshrl.u32 %v441, 7
          %v443 = vsub.s32 0, %v442
          %v444 = vrot.slane %v434, %v443
          %v446 = vsub.f32 %v388, %v444
          %v447 = vadd.f32 %v439, 1e-05
          %v448 = vrsqrt.pop %v447
          %v450 = vlaneseq
          %v451 = vshrl.u32 %v450, 7
          %v452 = vsub.s32 0, %v451
          %v453 = vrot.slane %v448, %v452
          %v455 = vmul.f32 %v446, %v453
          %v456 = vld [vmem:[%s3] sm:$0x1]
          %v458 = vlaneseq
          %v459 = vshrl.u32 %v458, 7
          %v460 = vsub.s32 0, %v459
          %v461 = vrot.slane %v456, %v460
          %v463 = vmul.f32 %v455, %v461
          %v464 = vld [vmem:[%s4] sm:$0x1]
          %v466 = vlaneseq
          %v467 = vshrl.u32 %v466, 7
          %v468 = vsub.s32 0, %v467
          %v469 = vrot.slane %v464, %v468
          %v471 = vadd.f32 %v463, %v469
          %v472 = vmax.f32 %v471, 0.0
          %v473 = vpack.c.bf16 %v472, %v472
          %v474 = vld [vmem:[%s5] sm:$0xf]
          %v475 = vld [vmem:[%s5 + $0x4] sm:$0xf]
          %v476 = vld [vmem:[%s5 + $0x8] sm:$0xf]
          %v477 = vld [vmem:[%s5 + $0xc] sm:$0xf]
          %v478 = vld [vmem:[%s5 + $0x10] sm:$0xf]
          %v479 = vld [vmem:[%s5 + $0x14] sm:$0xf]
          %v480 = vld [vmem:[%s5 + $0x18] sm:$0xf]
          %v481 = vld [vmem:[%s5 + $0x1c] sm:$0xf]
          %v482 = vld [vmem:[%s5 + $0x20] sm:$0xf]
          %v483 = vld [vmem:[%s5 + $0x24] sm:$0xf]
          %v484 = vld [vmem:[%s5 + $0x28] sm:$0xf]
          %v485 = vld [vmem:[%s5 + $0x2c] sm:$0xf]
          %v486 = vld [vmem:[%s5 + $0x30] sm:$0xf]
          %v487 = vld [vmem:[%s5 + $0x34] sm:$0xf]
          %v488 = vld [vmem:[%s5 + $0x38] sm:$0xf]
          %v489 = vld [vmem:[%s5 + $0x3c] sm:$0xf]
          %v490 = vld [vmem:[%s6] sm:$0x1]
          %v492 = vlaneseq
          %v493 = vshrl.u32 %v492, 7
          %v494 = vsub.s32 0, %v493
          %v495 = vrot.slane %v490, %v494
          %v513 = vunpack.c.l.b16 %v474
          %v514 = vunpack.c.l.b16 %v475
          %v515 = vunpack.c.l.b16 %v476
          %v516 = vunpack.c.l.b16 %v477
          %v517 = vunpack.c.l.b16 %v478
          %v518 = vunpack.c.l.b16 %v479
          %v519 = vunpack.c.l.b16 %v480
          %v520 = vunpack.c.l.b16 %v481
          %v521 = vunpack.c.l.b16 %v482
          %v522 = vunpack.c.l.b16 %v483
          %v523 = vunpack.c.l.b16 %v484
          %v524 = vunpack.c.l.b16 %v485
          %v525 = vunpack.c.l.b16 %v486
          %v526 = vunpack.c.l.b16 %v487
          %v527 = vunpack.c.l.b16 %v488
          %v528 = vunpack.c.l.b16 %v489
          %v529 = vpack.c.b16 %v514, %v513
          %v530 = vpack.c.b16 %v516, %v515
          %v531 = vpack.c.b16 %v518, %v517
          %v532 = vpack.c.b16 %v520, %v519
          %v533 = vpack.c.b16 %v522, %v521
          %v534 = vpack.c.b16 %v524, %v523
          %v535 = vpack.c.b16 %v526, %v525
          %v536 = vpack.c.b16 %v528, %v527
          %545 = vmatprep.subr.bf16.mxu0 0
          %546 = vmatpush1.bf16.msra.mxu0 %v529
          %547 = vmatprep.subr.bf16.mxu0 0
          %548 = vmatpush1.bf16.msra.mxu0 %v530
          %549 = vmatprep.subr.bf16.mxu0 0
          %550 = vmatpush1.bf16.msra.mxu0 %v531
          %551 = vmatprep.subr.bf16.mxu0 0
          %552 = vmatpush1.bf16.msra.mxu0 %v532
          %553 = vmatprep.subr.bf16.mxu0 0
          %554 = vmatpush1.bf16.msra.mxu0 %v533
          %555 = vmatprep.subr.bf16.mxu0 0
          %556 = vmatpush1.bf16.msra.mxu0 %v534
          %557 = vmatprep.subr.bf16.mxu0 0
          %558 = vmatpush1.bf16.msra.mxu0 %v535
          %559 = vmatprep.subr.bf16.mxu0 0
          %560 = vmatpush1.bf16.msra.mxu0 %v536
          %561 = vmatprep.subr.bf16.mxu0 0
          %562 = vmatpush1.bf16.msra.mxu0 0
          %563 = vmatprep.subr.bf16.mxu0 0
          %564 = vmatpush1.bf16.msra.mxu0 0
          %565 = vmatprep.subr.bf16.mxu0 0
          %566 = vmatpush1.bf16.msra.mxu0 0
          %567 = vmatprep.subr.bf16.mxu0 0
          %568 = vmatpush1.bf16.msra.mxu0 0
          %569 = vmatprep.subr.bf16.mxu0 0
          %570 = vmatpush1.bf16.msra.mxu0 0
          %571 = vmatprep.subr.bf16.mxu0 0
          %572 = vmatpush1.bf16.msra.mxu0 0
          %573 = vmatprep.subr.bf16.mxu0 0
          %574 = vmatpush1.bf16.msra.mxu0 0
          %575 = vmatprep.subr.bf16.mxu0 0
          %576 = vmatpush1.bf16.msra.mxu0 0
          %577 = vmatprep.mubr.bf16.mxu0 0
          %578 = vmatmul.mubr.bf16.gmra.mrb[0].mxu0 %v473
          %v579 = vpop.f32.mrb[0].mxu0
          %v580 = vadd.f32 %v495, %v579
          %v581 = vpop.f32.mrb[0].mxu0
          %v582 = vpop.f32.mrb[0].mxu0
          %v583 = vpop.f32.mrb[0].mxu0
          %584 = vdwg.mxu0
          %585 = vmax.xlane.f32.xlu0 %v580
          %v586 = vpop.xlane.xlu0 %585
          %v587 = vsub.f32 %v580, %v586
          %v588 = vmul.f32 %v587, 1.442695
          %v589 = vpow.pop %v588
          %590 = vadd.xlane.f32.xlu0 %v589
          %v591 = vpop.xlane.xlu0 %590
          %v592 = vlog2.pop %v591
          %v593 = vmul.f32 %v592, 0.6931472
          %v594 = vsub.f32 %v587, %v593
          %595 = vst [vmem:[#allocation4] sm:$0xff] %v594
        $region60: #{linear_cls_forward.1} parent=47 // pred_fallthru
          _
        // Predicated region
        $region61: #{linear_cls_forward.1} parent=47 // pred_check
          %p596 = pneg %p201
        $region62: #{linear_cls_forward.1} parent=47 // pred_check_branch
          %598 = sbr.rel (%p596) target = $region64
        $region63: #{linear_cls_forward.1} parent=47 // pred_region
          %s600 = ssub.s32 128, 128
          %601 = vsyncadd [#allocation5], %s600
          %s602 = smul.addr %s24, 128
          %s603 = scalar_lea.hbm %s7, %s602
          %s605 = sshll.u32 [#allocation4], 4
          %s606 = int_to_ptr.vmem [resolvable:$true] %s605
          %608 = dma.vmem_to_hbm [thread:$0]  %s606, 128, %s603, [#allocation5]
        $region64: #{linear_cls_forward.1} parent=47 // pred_fallthru
          _
        // Predicated region
        $region65: #{linear_cls_forward.1} parent=47 // pred_check
          %p609 = pneg %p201
        $region66: #{linear_cls_forward.1} parent=47 // pred_check_branch
          %611 = sbr.rel (%p609) target = $region68
        $region67: #{linear_cls_forward.1} parent=47 // pred_region
          %612 = dma.done [#allocation5], 128
        $region68: #{linear_cls_forward.1} parent=47 // pred_fallthru
          _
      $region48: #{linear_cls_forward.1} parent=5 // pred_fallthru
        _
      %p613 = scmp.le.s32.totalorder 2, %s14
      // Predicated region
      $region69: #{linear_cls_forward.1} parent=5 // pred_check
        %p614 = pneg %p613
      $region70: #{linear_cls_forward.1} parent=5 // pred_check_branch
        %616 = sbr.rel (%p614) target = $region72
      $region71: #{linear_cls_forward.1} parent=5 // pred_region
        %s617 = ssub.s32 %s14, 2
      $region72: #{linear_cls_forward.1} parent=5 // pred_fallthru
        _
    $region6: #{linear_cls_forward.1} parent=1 // loop_footer
      %s18 = sadd.s32 1, %s14
    $region7: #{linear_cls_forward.1} parent=1 // loop_footer_branch
      %13 = sbr.rel target = $region3
    $region8: #{linear_cls_forward.1} parent=1 // loop_exit
      _
    %618 = vsyncpa [#allocation5], 1
    %s619 = scalar_lea.sflag [#allocation5], 1
    %620 = vsyncpa %s619, 1

</llo_original>
